<compile_context>
chip_gen: v5e
topology: v5e:2x2
jax: 0.10.0
libtpu: 0.0.40
codegen_flags: <defaults>
</compile_context>

<pallas_src>
import jax
import jax.numpy as jnp
import numpy as np
from jax import lax
from jax.experimental import pallas as pl
from jax.experimental.pallas import tpu as pltpu

# ---- module constants (from the PyTorch module) ----
IN_CHANNELS = 8
OUT_CHANNELS = 16
KERNEL_SIZE = 3
STRIDE = 2
PADDING = 1
OUTPUT_PADDING = 1
POOL_K = 2
CLAMP_MIN = 0.0
CLAMP_MAX = 1.0

# The max-subtraction-free softmax in the kernel is only safe because the preceding clamp
# bounds the logits; exp(CLAMP_MAX) must be finite in f32 with plenty of headroom.
assert CLAMP_MAX <= 80.0, "max-free softmax requires a small CLAMP_MAX"


def _fused_kernel(p_ref, w_ref, b_ref, o_ref):
    """One lane-tile grid step.

    p_ref: (CKK, tile_n)   effective-2x2x2 im2col rows (contraction on sublane axis)
    w_ref: (Cout, CKK)     folded conv-transpose + pool weights (pool's 1/8 folded in)
    b_ref: (Cout, 1)       bias
    o_ref: (Cout, tile_n)  2 * softmax(clamp(conv)), lane-dense last dim
    """
    acc = jnp.dot(w_ref[...], p_ref[...], preferred_element_type=jnp.float32)
    x = jnp.clip(acc + b_ref[...], CLAMP_MIN, CLAMP_MAX)
    # x in [0, 1] -> exp cannot overflow, so the usual max-subtraction is dropped.
    e = jnp.exp(x)
    s = jnp.sum(e, axis=0, keepdims=True)
    # EUP approx reciprocal + one Newton-Raphson step (full f32 accuracy, no VALU divide).
    r = pl.reciprocal(s, approx=True)
    r = r * (2.0 - s * r)
    o_ref[...] = (e * (2.0 * r)).astype(o_ref.dtype)


def _pick_tile(n):
    """Largest lane tile (multiple of 128, <= 2048) that still yields >= 2 grid steps."""
    for cand in (2048, 1024, 512, 256, 128):
        if n >= 2 * cand:
            return cand
    return 128


def _fold_dim(a, axis):
    """Fold a size-3 flipped-tap axis into the effective size-2 pooled-tap axis."""
    a01 = lax.slice_in_dim(a, 0, 2, axis=axis).sum(axis=axis, keepdims=True)
    a2 = lax.slice_in_dim(a, 2, 3, axis=axis)
    return jnp.concatenate([a01, a2], axis=axis)


@jax.jit
def model_forward(x, weight, bias):
    """x: (B, Cin, D, H, W) NCDHW; weight: (Cin, Cout, K, K, K); bias: (Cout,)."""
    B, Cin, D, H, W = x.shape
    K, S, P, OP = KERNEL_SIZE, STRIDE, PADDING, OUTPUT_PADDING
    Cout = weight.shape[1]
    # The effective-kernel fold below is an exact rewrite only for these constants.
    assert (K, S, P, OP, POOL_K) == (3, 2, 1, 1, 2)

    # conv_transpose3d output spatial sizes; after the 2x pool they equal the input sizes.
    Do = (D - 1) * S - 2 * P + K + OP
    Ho = (H - 1) * S - 2 * P + K + OP
    Wo = (W - 1) * S - 2 * P + K + OP
    Dp, Hp, Wp = Do // POOL_K, Ho // POOL_K, Wo // POOL_K
    assert (Dp, Hp, Wp) == (D, H, W)
    n_pooled = Dp * Hp * Wp
    n_taps = POOL_K ** 3            # 8 effective taps
    CKK = n_taps * Cin              # 64
    N = B * n_pooled                # batch flattened into the lane axis

    # ---- glue: effective 2x2x2 im2col on the ORIGINAL input, contraction-major ----
    xt = jnp.transpose(x, (1, 0, 2, 3, 4))                        # (Cin, B, D, H, W), tiny
    xp = jnp.pad(xt, ((0, 0), (0, 0), (0, 1), (0, 1), (0, 1)))    # one trailing zero / dim
    taps = [xp[:, :, td:td + Dp, th:th + Hp, tw:tw + Wp]
            for td in range(2) for th in range(2) for tw in range(2)]
    patches = jnp.stack(taps, axis=0).reshape(CKK, N)             # row = tap*Cin + ci

    # ---- glue: fold the 27 flipped taps + 2x2x2 mean pool into the effective kernel ----
    wflip = jnp.flip(weight, axis=(2, 3, 4))                       # (Cin, Cout, 3, 3, 3)
    w_eff = _fold_dim(_fold_dim(_fold_dim(wflip, 2), 3), 4)        # (Cin, Cout, 2, 2, 2)
    w2t = jnp.transpose(w_eff, (1, 2, 3, 4, 0)).reshape(Cout, CKK)  # col = tap*Cin + ci
    w2t = (w2t * (1.0 / n_taps)).astype(jnp.float32)               # fold pool's 1/8
    b2 = bias.reshape(Cout, 1).astype(jnp.float32)

    # ---- lane tiling: 1-D parallel grid over big lane-dense tiles ----
    tile_n = _pick_tile(N)
    n_tiles = pl.cdiv(N, tile_n)
    Npad = n_tiles * tile_n
    if Npad != N:                   # keep every block a multiple of 128 lanes wide
        patches = jnp.pad(patches, ((0, 0), (0, Npad - N)))

    out = pl.pallas_call(
        _fused_kernel,
        out_shape=jax.ShapeDtypeStruct((Cout, Npad), jnp.float32),
        grid=(n_tiles,),
        in_specs=[
            pl.BlockSpec((CKK, tile_n), lambda t: (0, t)),
            pl.BlockSpec((Cout, CKK), lambda t: (0, 0)),
            pl.BlockSpec((Cout, 1), lambda t: (0, 0)),
        ],
        out_specs=pl.BlockSpec((Cout, tile_n), lambda t: (0, t)),
        compiler_params=pltpu.CompilerParams(
            dimension_semantics=("parallel",)),
    )(patches, w2t, b2)

    out = out[:, :N].reshape(Cout, B, Dp, Hp, Wp)
    return jnp.transpose(out, (1, 0, 2, 3, 4))    # small (64 KB) copy back to NCDHW


def _reference(x, weight, bias):
    """Pure-JAX reference of module_fn (for correctness check)."""
    B, Cin, D, H, W = x.shape
    K, S, P, OP = KERNEL_SIZE, STRIDE, PADDING, OUTPUT_PADDING
    Cout = weight.shape[1]
    lo, hi = K - 1 - P, K - 1 - P + OP
    wt = jnp.transpose(jnp.flip(weight, axis=(2, 3, 4)), (1, 0, 2, 3, 4))  # OIDHW
    y = lax.conv_general_dilated(
        x, wt, window_strides=(1, 1, 1),
        padding=[(lo, hi)] * 3, lhs_dilation=(S, S, S),
        dimension_numbers=("NCDHW", "OIDHW", "NCDHW"))
    y = y + bias[None, :, None, None, None]
    Do, Ho, Wo = y.shape[2], y.shape[3], y.shape[4]
    Dp, Hp, Wp = Do // POOL_K, Ho // POOL_K, Wo // POOL_K
    y = y.reshape(B, Cout, Dp, POOL_K, Hp, POOL_K, Wp, POOL_K).mean(axis=(3, 5, 7))
    y = jnp.clip(y, CLAMP_MIN, CLAMP_MAX)
    return jax.nn.softmax(y, axis=1) * 2.0


if __name__ == "__main__":
    key = jax.random.PRNGKey(0)
    kx, kw, kb = jax.random.split(key, 3)

    B, D = 2, 8  # input spatial 8 -> conv-transpose out 16 -> pooled 8
    x = jax.random.normal(kx, (B, IN_CHANNELS, D, D, D), jnp.float32)

    # deterministic parameter init (ConvTranspose3d-style uniform bounds)
    fan = IN_CHANNELS * KERNEL_SIZE ** 3
    bound = 1.0 / np.sqrt(fan)
    weight = jax.random.uniform(
        kw, (IN_CHANNELS, OUT_CHANNELS, KERNEL_SIZE, KERNEL_SIZE, KERNEL_SIZE),
        jnp.float32, minval=-bound, maxval=bound)
    bias = jax.random.uniform(kb, (OUT_CHANNELS,), jnp.float32,
                              minval=-bound, maxval=bound)

    out = model_forward(x, weight, bias)
    out = jax.block_until_ready(out)

    ref = jax.block_until_ready(_reference(x, weight, bias))
    assert out.shape == ref.shape, (out.shape, ref.shape)
    np.testing.assert_allclose(np.asarray(out), np.asarray(ref), rtol=1e-4, atol=1e-5)

    print("KERNEL_OK")
</pallas_src>

<mosaic_0001>
module attributes {stable_mosaic.version = 11 : i64} {
  func.func @_fused_kernel(%arg0: i32, %arg1: memref<64x512xf32, #tpu.memory_space<vmem>>, %arg2: memref<16x64xf32, #tpu.memory_space<vmem>>, %arg3: memref<16x1xf32, #tpu.memory_space<vmem>>, %arg4: memref<16x512xf32, #tpu.memory_space<vmem>>) attributes {dimension_semantics = [#tpu.dimension_semantics<parallel>], iteration_bounds = array<i64: 2>, scalar_prefetch = 0 : i64, scratch_operands = 0 : i64, tpu.core_type = #tpu.core_type<tc>, window_params = [{transform_indices = @transform_0, window_bounds = array<i64: 64, 512>}, {pipeline_mode = #tpu.pipeline_mode<synchronous>, transform_indices = @transform_1, window_bounds = array<i64: 16, 64>}, {pipeline_mode = #tpu.pipeline_mode<synchronous>, transform_indices = @transform_2, window_bounds = array<i64: 16, 1>}, {transform_indices = @transform_3, window_bounds = array<i64: 16, 512>}]} {
    %c0 = arith.constant 0 : index
    %c0_0 = arith.constant 0 : index
    %0 = vector.load %arg2[%c0, %c0_0] : memref<16x64xf32, #tpu.memory_space<vmem>>, vector<16x64xf32>
    %c0_1 = arith.constant 0 : index
    %c0_2 = arith.constant 0 : index
    %1 = vector.load %arg1[%c0_1, %c0_2] : memref<64x512xf32, #tpu.memory_space<vmem>>, vector<64x512xf32>
    %cst = arith.constant dense<0.000000e+00> : vector<16x512xf32>
    %2 = tpu.matmul %0, %1, %cst {dimension_numbers = #tpu.dot_dimension_numbers<[1], [0], [0], [1], [0, 0, 1, 1], [], []>} : vector<16x64xf32>, vector<64x512xf32>, vector<16x512xf32> -> vector<16x512xf32>
    %c0_3 = arith.constant 0 : index
    %c0_4 = arith.constant 0 : index
    %3 = vector.load %arg3[%c0_3, %c0_4] : memref<16x1xf32, #tpu.memory_space<vmem>>, vector<16x1xf32>
    %4 = vector.broadcast %3 : vector<16x1xf32> to vector<16x512xf32>
    %5 = arith.addf %2, %4 : vector<16x512xf32>
    %cst_5 = arith.constant 0.000000e+00 : f32
    %cst_6 = arith.constant 1.000000e+00 : f32
    %6 = vector.broadcast %cst_5 : f32 to vector<16x512xf32>
    %7 = arith.maximumf %6, %5 : vector<16x512xf32>
    %8 = vector.broadcast %cst_6 : f32 to vector<16x512xf32>
    %9 = arith.minimumf %8, %7 : vector<16x512xf32>
    %10 = math.exp %9 : vector<16x512xf32>
    %cst_7 = arith.constant dense<0.000000e+00> : vector<512xf32>
    %11 = vector.multi_reduction <add>, %10, %cst_7 [0] : vector<16x512xf32> to vector<512xf32>
    %12 = vector.shape_cast %11 : vector<512xf32> to vector<1x512xf32>
    %13 = tpu.reciprocal %12 {approx = true} : vector<1x512xf32> -> vector<1x512xf32>
    %14 = arith.mulf %12, %13 : vector<1x512xf32>
    %cst_8 = arith.constant 2.000000e+00 : f32
    %15 = vector.broadcast %cst_8 : f32 to vector<1x512xf32>
    %16 = arith.subf %15, %14 : vector<1x512xf32>
    %17 = arith.mulf %13, %16 : vector<1x512xf32>
    %cst_9 = arith.constant 2.000000e+00 : f32
    %18 = vector.broadcast %cst_9 : f32 to vector<1x512xf32>
    %19 = arith.mulf %18, %17 : vector<1x512xf32>
    %20 = vector.broadcast %19 : vector<1x512xf32> to vector<16x512xf32>
    %21 = arith.mulf %10, %20 : vector<16x512xf32>
    %c0_10 = arith.constant 0 : index
    %c0_11 = arith.constant 0 : index
    %22 = vector.load %arg4[%c0_10, %c0_11] : memref<16x512xf32, #tpu.memory_space<vmem>>, vector<16x512xf32>
    tpu.vector_store %arg4[%c0_10, %c0_11], %21 {strides = array<i32>} : memref<16x512xf32, #tpu.memory_space<vmem>>, vector<16x512xf32>,
    return
  }
  func.func @transform_0(%arg0: i32) -> (i32, i32) {
    %c0_i32 = arith.constant 0 : i32
    %c0_i32_0 = arith.constant 0 : i32
    return %c0_i32, %arg0 : i32, i32
  }
  func.func @transform_1(%arg0: i32) -> (i32, i32) {
    %c0_i32 = arith.constant 0 : i32
    %c0_i32_0 = arith.constant 0 : i32
    %c0_i32_1 = arith.constant 0 : i32
    return %c0_i32, %c0_i32_0 : i32, i32
  }
  func.func @transform_2(%arg0: i32) -> (i32, i32) {
    %c0_i32 = arith.constant 0 : i32
    %c0_i32_0 = arith.constant 0 : i32
    %c0_i32_1 = arith.constant 0 : i32
    return %c0_i32, %c0_i32_0 : i32, i32
  }
  func.func @transform_3(%arg0: i32) -> (i32, i32) {
    %c0_i32 = arith.constant 0 : i32
    %c0_i32_0 = arith.constant 0 : i32
    return %c0_i32, %arg0 : i32, i32
  }
}

</mosaic_0001>

<llo_original>
// kernel: reverse.1
$region0: #{reverse.1}
  #allocation0 [shape = 's32[1]{0}', space=sflag, size = 0x4, scoped, tag = 'scoped memory for reverse.1']
  %s0 = inlined_call_operand.vmem [shape: f32[8,16,1,3,3], index: 0, kind: input, shape index: {}]
  %s1 = inlined_call_operand.vmem [shape: f32[8,16,1,3,3], index: 1, kind: output, shape index: {}]
  %s2 = scalar_lea.vmem %s0, 64
  %v3 = vld [vmem:[%s2] sm:$0xff]
  %4 = vst [vmem:[%s1] sm:$0xff] %v3
  %s5 = scalar_lea.vmem %s0, 40
  %v6 = vld [vmem:[%s5] sm:$0xff]
  %s7 = scalar_lea.vmem %s1, 24
  %8 = vst [vmem:[%s7] sm:$0xff] %v6
  %s9 = scalar_lea.vmem %s0, 16
  %v10 = vld [vmem:[%s9] sm:$0xff]
  %s11 = scalar_lea.vmem %s1, 48
  %12 = vst [vmem:[%s11] sm:$0xff] %v10
  %s13 = scalar_lea.vmem %s0, 56
  %v14 = vld [vmem:[%s13] sm:$0xff]
  %s15 = scalar_lea.vmem %s1, 8
  %16 = vst [vmem:[%s15] sm:$0xff] %v14
  %s17 = scalar_lea.vmem %s0, 32
  %v18 = vld [vmem:[%s17] sm:$0xff]
  %s19 = scalar_lea.vmem %s1, 32
  %20 = vst [vmem:[%s19] sm:$0xff] %v18
  %s21 = scalar_lea.vmem %s0, 8
  %v22 = vld [vmem:[%s21] sm:$0xff]
  %s23 = scalar_lea.vmem %s1, 56
  %24 = vst [vmem:[%s23] sm:$0xff] %v22
  %s25 = scalar_lea.vmem %s0, 48
  %v26 = vld [vmem:[%s25] sm:$0xff]
  %s27 = scalar_lea.vmem %s1, 16
  %28 = vst [vmem:[%s27] sm:$0xff] %v26
  %s29 = scalar_lea.vmem %s0, 24
  %v30 = vld [vmem:[%s29] sm:$0xff]
  %s31 = scalar_lea.vmem %s1, 40
  %32 = vst [vmem:[%s31] sm:$0xff] %v30
  %v33 = vld [vmem:[%s0] sm:$0xff]
  %s34 = scalar_lea.vmem %s1, 64
  %35 = vst [vmem:[%s34] sm:$0xff] %v33

// kernel: model_forward.1
$region0: #{model_forward.1}
  #allocation0 [shape = 'u32[]', space=smem, size = 0x4, offset = 0x4, fixed_abs, tag = 'smem constant byte address 0x4 - core index']
  #allocation1 [shape = 'u32[72,128]{1,0:T(1,128)}', space=vmem, size = 0x9000, scoped, tag = 'internal scratch']
  %s0 = inlined_call_operand.vmem [shape: f32[64,1024], index: 0, kind: input, shape index: {}]
  %s1 = inlined_call_operand.vmem [shape: f32[16,64], index: 1, kind: input, shape index: {}]
  %s2 = inlined_call_operand.vmem [shape: f32[16,1], index: 2, kind: input, shape index: {}]
  %s3 = inlined_call_operand.vmem [shape: f32[16,1024], index: 3, kind: output, shape index: {}]
  %s4 = sld [smem:[#allocation0]]
  $region87: #{model_forward.1} parent=0
    _
  %s6 = ssub.s32 1, %s4
  %s7 = scalar_select 0, %s6, %s4
  $region1: #{model_forward.1} parent=0
    #allocation2 [shape = 'u8[262144]{0}', space=vmem, size = 0x40000, scoped, tag = 'input window, operand 0']
    #allocation3 [shape = 'u8[65536]{0}', space=vmem, size = 0x10000, scoped, tag = 'output window, operand 0']
    loop: start=0, step=1, limit=4
    $region2: #{model_forward.1} parent=1 // loop_pre_header
      _
    $region3: #{model_forward.1} parent=1 // loop_header
      %s9 = sphi 0, %s13
      %p10 = scmp.ge.s32.totalorder %s9, 4
      %s19 = sphi 0, %s21
      %s22 = sphi 0, %s19
      %s23 = sphi 0, %s22
      %s39 = sphi 0, %s23
      %s43 = sphi 0, %s43
      %s45 = sphi 0, %s43
      %s46 = sphi 0, %s45
      %s60 = sphi 0, %s46
      %s64 = sphi 0, %s64
      %s66 = sphi 0, %s64
      %s67 = sphi 0, %s66
      %s81 = sphi 0, %s67
      %s87 = sphi 0, %s89
      %s90 = sphi 0, %s87
      %s91 = sphi 0, %s90
      %s107 = sphi 0, %s91
    $region4: #{model_forward.1} parent=1 // loop_header_branch
      %12 = sbr.rel (%p10) target = $region8
    $region5: #{model_forward.1} parent=1 // loop_body
      %s14 = ssub.s32 %s9, 1
      %s15 = ssub.s32 %s9, 2
      %s16 = sadd.s32 %s9, 1
      %s17 = ssub.s32 %s9, %s16
      %p18 = scmp.eq.s32.totalorder %s17, 0
      %s20 = sadd.s32 %s19, 1
      %s21 = scalar_select %p18, %s19, %s20
      %p24 = pneg %p18
      %p25 = scmp.eq.s32.totalorder %s9, 1
      %p26 = por %p24, %p25
      %p27 = scmp.ne.s32.totalorder %s19, %s22
      %p28 = scmp.eq.s32.totalorder %s9, 0
      %p29 = por %p27, %p28
      %p30 = scmp.ne.s32.totalorder %s19, %s22
      %p31 = scmp.eq.s32.totalorder %s14, 1
      %p32 = por %p30, %p31
      %p33 = scmp.ne.s32.totalorder %s22, %s23
      %p34 = scmp.eq.s32.totalorder %s14, 0
      %p35 = por %p33, %p34
      %p36 = scmp.ne.s32.totalorder %s22, %s23
      %p37 = scmp.eq.s32.totalorder %s15, 1
      %p38 = por %p36, %p37
      %p40 = scmp.ne.s32.totalorder %s23, %s39
      %p41 = scmp.eq.s32.totalorder %s15, 0
      %p42 = por %p40, %p41
      %s44 = sadd.s32 %s43, 1
      %p47 = scmp.eq.s32.totalorder %s9, 1
      %p48 = scmp.ne.s32.totalorder %s43, %s45
      %p49 = scmp.eq.s32.totalorder %s9, 0
      %p50 = por %p48, %p49
      %p51 = scmp.ne.s32.totalorder %s43, %s45
      %p52 = scmp.eq.s32.totalorder %s14, 1
      %p53 = por %p51, %p52
      %p54 = scmp.ne.s32.totalorder %s45, %s46
      %p55 = scmp.eq.s32.totalorder %s14, 0
      %p56 = por %p54, %p55
      %p57 = scmp.ne.s32.totalorder %s45, %s46
      %p58 = scmp.eq.s32.totalorder %s15, 1
      %p59 = por %p57, %p58
      %p61 = scmp.ne.s32.totalorder %s46, %s60
      %p62 = scmp.eq.s32.totalorder %s15, 0
      %p63 = por %p61, %p62
      %s65 = sadd.s32 %s64, 1
      %p68 = scmp.eq.s32.totalorder %s9, 1
      %p69 = scmp.ne.s32.totalorder %s64, %s66
      %p70 = scmp.eq.s32.totalorder %s9, 0
      %p71 = por %p69, %p70
      %p72 = scmp.ne.s32.totalorder %s64, %s66
      %p73 = scmp.eq.s32.totalorder %s14, 1
      %p74 = por %p72, %p73
      %p75 = scmp.ne.s32.totalorder %s66, %s67
      %p76 = scmp.eq.s32.totalorder %s14, 0
      %p77 = por %p75, %p76
      %p78 = scmp.ne.s32.totalorder %s66, %s67
      %p79 = scmp.eq.s32.totalorder %s15, 1
      %p80 = por %p78, %p79
      %p82 = scmp.ne.s32.totalorder %s67, %s81
      %p83 = scmp.eq.s32.totalorder %s15, 0
      %p84 = por %p82, %p83
      %s85 = ssub.s32 %s9, %s16
      %p86 = scmp.eq.s32.totalorder %s85, 0
      %s88 = sadd.s32 %s87, 1
      %s89 = scalar_select %p86, %s87, %s88
      %p92 = pneg %p86
      %p93 = scmp.eq.s32.totalorder %s9, 1
      %p94 = por %p92, %p93
      %p95 = scmp.ne.s32.totalorder %s87, %s90
      %p96 = scmp.eq.s32.totalorder %s9, 0
      %p97 = por %p95, %p96
      %p98 = scmp.ne.s32.totalorder %s87, %s90
      %p99 = scmp.eq.s32.totalorder %s14, 1
      %p100 = por %p98, %p99
      %p101 = scmp.ne.s32.totalorder %s90, %s91
      %p102 = scmp.eq.s32.totalorder %s14, 0
      %p103 = por %p101, %p102
      %p104 = scmp.ne.s32.totalorder %s90, %s91
      %p105 = scmp.eq.s32.totalorder %s15, 1
      %p106 = por %p104, %p105
      %p108 = scmp.ne.s32.totalorder %s91, %s107
      %p109 = scmp.eq.s32.totalorder %s15, 0
      %p110 = por %p108, %p109
      %p111 = scmp.le.s32.totalorder 1, %s9
      %p112 = scmp.lt.s32.totalorder %s9, 3
      %p113 = pnand %p111, %p112
      %p114 = pneg %p113
      // Predicated region
      $region9: #{model_forward.1} parent=5 // pred_check
        _
      $region10: #{model_forward.1} parent=5 // pred_check_branch
        %116 = sbr.rel (%p113) target = $region12
      $region11: #{model_forward.1} parent=5 // pred_region
        %s117 = ssub.s32 %s9, 1
        // Predicated region
        $region13: #{model_forward.1} parent=11 // pred_check
          %p118 = pneg %p56
        $region14: #{model_forward.1} parent=11 // pred_check_branch
          %120 = sbr.rel (%p118) target = $region16
        $region15: #{model_forward.1} parent=11 // pred_region
          _
        $region16: #{model_forward.1} parent=11 // pred_fallthru
          _
        // Predicated region
        $region17: #{model_forward.1} parent=11 // pred_check
          %p121 = pneg %p77
        $region18: #{model_forward.1} parent=11 // pred_check_branch
          %123 = sbr.rel (%p121) target = $region20
        $region19: #{model_forward.1} parent=11 // pred_region
          _
        $region20: #{model_forward.1} parent=11 // pred_fallthru
          _
      $region12: #{model_forward.1} parent=5 // pred_fallthru
        _
      %p124 = scmp.lt.s32.totalorder %s9, 2
      // Predicated region
      $region21: #{model_forward.1} parent=5 // pred_check
        %p125 = pneg %p124
      $region22: #{model_forward.1} parent=5 // pred_check_branch
        %127 = sbr.rel (%p125) target = $region24
      $region23: #{model_forward.1} parent=5 // pred_region
        // Predicated region
        $region25: #{model_forward.1} parent=23 // pred_check
          %p128 = pneg %p29
        $region26: #{model_forward.1} parent=23 // pred_check_branch
          %130 = sbr.rel (%p128) target = $region28
        $region27: #{model_forward.1} parent=23 // pred_region
          %s131 = sand.u32 %s19, 1
          %s132 = sand.u32 %s19, 1
          %s133 = smul.addr %s132, 256
          %s134 = scalar_lea.vmem [#allocation2], %s133
          %s135 = smul.u32 4, %s9
          %s136 = smul.addr %s135, 8
          %s137 = scalar_lea.vmem %s0, %s136
          // Predicated region
          $region29: #{model_forward.1} parent=27 // pred_check
            _
          $region30: #{model_forward.1} parent=27 // pred_check_branch
            %139 = sbr.rel (0) target = $region32
          $region31: #{model_forward.1} parent=27 // pred_region
            // Predicated region
            $region33: #{model_forward.1} parent=31 // pred_check
              _
            $region34: #{model_forward.1} parent=31 // pred_check_branch
              %141 = sbr.rel (0) target = $region36
            $region35: #{model_forward.1} parent=31 // pred_region
              loop: start=0, step=1, limit=1
              $region37: #{model_forward.1} parent=35 // loop_pre_header
                _
              $region38: #{model_forward.1} parent=35 // loop_header
                %s143 = sphi 0, %s147
                %p144 = scmp.ge.s32.totalorder %s143, 1
                %s148 = sphi %s137, %s137
                %s149 = sphi %s134, %s134
              $region39: #{model_forward.1} parent=35 // loop_header_branch
                %146 = sbr.rel (%p144) target = $region43
              $region40: #{model_forward.1} parent=35 // loop_body
                %v150 = vld [vmem:[%s148] sm:$0xff]
                %151 = vst [vmem:[%s149] sm:$0xff] %v150
                %v152 = vld [vmem:[%s148 + $0x8] sm:$0xff]
                %153 = vst [vmem:[%s149 + $0x8] sm:$0xff] %v152
                %v154 = vld [vmem:[%s148 + $0x10] sm:$0xff]
                %155 = vst [vmem:[%s149 + $0x10] sm:$0xff] %v154
                %v156 = vld [vmem:[%s148 + $0x18] sm:$0xff]
                %157 = vst [vmem:[%s149 + $0x18] sm:$0xff] %v156
                %v158 = vld [vmem:[%s148 + $0x40] sm:$0xff]
                %159 = vst [vmem:[%s149 + $0x20] sm:$0xff] %v158
                %v160 = vld [vmem:[%s148 + $0x48] sm:$0xff]
                %161 = vst [vmem:[%s149 + $0x28] sm:$0xff] %v160
                %v162 = vld [vmem:[%s148 + $0x50] sm:$0xff]
                %163 = vst [vmem:[%s149 + $0x30] sm:$0xff] %v162
                %v164 = vld [vmem:[%s148 + $0x58] sm:$0xff]
                %165 = vst [vmem:[%s149 + $0x38] sm:$0xff] %v164
                %v166 = vld [vmem:[%s148 + $0x80] sm:$0xff]
                %167 = vst [vmem:[%s149 + $0x40] sm:$0xff] %v166
                %v168 = vld [vmem:[%s148 + $0x88] sm:$0xff]
                %169 = vst [vmem:[%s149 + $0x48] sm:$0xff] %v168
                %v170 = vld [vmem:[%s148 + $0x90] sm:$0xff]
                %171 = vst [vmem:[%s149 + $0x50] sm:$0xff] %v170
                %v172 = vld [vmem:[%s148 + $0x98] sm:$0xff]
                %173 = vst [vmem:[%s149 + $0x58] sm:$0xff] %v172
                %v174 = vld [vmem:[%s148 + $0xc0] sm:$0xff]
                %175 = vst [vmem:[%s149 + $0x60] sm:$0xff] %v174
                %v176 = vld [vmem:[%s148 + $0xc8] sm:$0xff]
                %177 = vst [vmem:[%s149 + $0x68] sm:$0xff] %v176
                %v178 = vld [vmem:[%s148 + $0xd0] sm:$0xff]
                %179 = vst [vmem:[%s149 + $0x70] sm:$0xff] %v178
                %v180 = vld [vmem:[%s148 + $0xd8] sm:$0xff]
                %181 = vst [vmem:[%s149 + $0x78] sm:$0xff] %v180
                %v182 = vld [vmem:[%s148 + $0x100] sm:$0xff]
                %183 = vst [vmem:[%s149 + $0x80] sm:$0xff] %v182
                %v184 = vld [vmem:[%s148 + $0x108] sm:$0xff]
                %185 = vst [vmem:[%s149 + $0x88] sm:$0xff] %v184
                %v186 = vld [vmem:[%s148 + $0x110] sm:$0xff]
                %187 = vst [vmem:[%s149 + $0x90] sm:$0xff] %v186
                %v188 = vld [vmem:[%s148 + $0x118] sm:$0xff]
                %189 = vst [vmem:[%s149 + $0x98] sm:$0xff] %v188
                %v190 = vld [vmem:[%s148 + $0x140] sm:$0xff]
                %191 = vst [vmem:[%s149 + $0xa0] sm:$0xff] %v190
                %v192 = vld [vmem:[%s148 + $0x148] sm:$0xff]
                %193 = vst [vmem:[%s149 + $0xa8] sm:$0xff] %v192
                %v194 = vld [vmem:[%s148 + $0x150] sm:$0xff]
                %195 = vst [vmem:[%s149 + $0xb0] sm:$0xff] %v194
                %v196 = vld [vmem:[%s148 + $0x158] sm:$0xff]
                %197 = vst [vmem:[%s149 + $0xb8] sm:$0xff] %v196
                %v198 = vld [vmem:[%s148 + $0x180] sm:$0xff]
                %199 = vst [vmem:[%s149 + $0xc0] sm:$0xff] %v198
                %v200 = vld [vmem:[%s148 + $0x188] sm:$0xff]
                %201 = vst [vmem:[%s149 + $0xc8] sm:$0xff] %v200
                %v202 = vld [vmem:[%s148 + $0x190] sm:$0xff]
                %203 = vst [vmem:[%s149 + $0xd0] sm:$0xff] %v202
                %v204 = vld [vmem:[%s148 + $0x198] sm:$0xff]
                %205 = vst [vmem:[%s149 + $0xd8] sm:$0xff] %v204
                %v206 = vld [vmem:[%s148 + $0x1c0] sm:$0xff]
                %207 = vst [vmem:[%s149 + $0xe0] sm:$0xff] %v206
                %v208 = vld [vmem:[%s148 + $0x1c8] sm:$0xff]
                %209 = vst [vmem:[%s149 + $0xe8] sm:$0xff] %v208
                %v210 = vld [vmem:[%s148 + $0x1d0] sm:$0xff]
                %211 = vst [vmem:[%s149 + $0xf0] sm:$0xff] %v210
                %v212 = vld [vmem:[%s148 + $0x1d8] sm:$0xff]
                %213 = vst [vmem:[%s149 + $0xf8] sm:$0xff] %v212
              $region41: #{model_forward.1} parent=35 // loop_footer
                %s147 = sadd.s32 1, %s143
              $region42: #{model_forward.1} parent=35 // loop_footer_branch
                %142 = sbr.rel target = $region38
              $region43: #{model_forward.1} parent=35 // loop_exit
                _
            $region36: #{model_forward.1} parent=31 // pred_fallthru
              _
            // Predicated region
            $region44: #{model_forward.1} parent=31 // pred_check
              _
            $region45: #{model_forward.1} parent=31 // pred_check_branch
              %215 = sbr.rel target = $region47
            $region46: #{model_forward.1} parent=31 // pred_region
              _
            $region47: #{model_forward.1} parent=31 // pred_fallthru
              _
          $region32: #{model_forward.1} parent=27 // pred_fallthru
            _
          %216 = vnop
        $region28: #{model_forward.1} parent=23 // pred_fallthru
          _
      $region24: #{model_forward.1} parent=5 // pred_fallthru
        _
      %p217 = scmp.le.s32.totalorder 1, %s9
      %p218 = scmp.lt.s32.totalorder %s9, 3
      %p219 = pnand %p217, %p218
      %p220 = pneg %p219
      // Predicated region
      $region48: #{model_forward.1} parent=5 // pred_check
        _
      $region49: #{model_forward.1} parent=5 // pred_check_branch
        %222 = sbr.rel (%p219) target = $region51
      $region50: #{model_forward.1} parent=5 // pred_region
        %s223 = ssub.s32 %s9, 1
        %s224 = sand.u32 %s22, 1
        %s225 = sand.u32 %s22, 1
        %s226 = smul.addr %s225, 256
        %s227 = scalar_lea.vmem [#allocation2], %s226
        // Predicated region
        $region52: #{model_forward.1} parent=50 // pred_check
          %p228 = pneg %p35
        $region53: #{model_forward.1} parent=50 // pred_check_branch
          %230 = sbr.rel (%p228) target = $region55
        $region54: #{model_forward.1} parent=50 // pred_region
          _
        $region55: #{model_forward.1} parent=50 // pred_fallthru
          _
        %s231 = sand.u32 %s22, 1
        %s232 = sand.u32 %s22, 1
        %s233 = smul.addr %s232, 256
        %s234 = scalar_lea.vmem [#allocation2], %s233
        %p235 = pneg %p35
        %p236 = pneg %p32
        %p237 = pneg %p56
        %p238 = pneg %p53
        %p239 = pneg %p77
        %p240 = pneg %p74
        %p241 = pneg %p103
        %p242 = pneg %p100
        %s243 = sand.u32 %s90, 1
        %s244 = sand.u32 %s90, 1
        %s245 = smul.addr %s244, 64
        %s246 = scalar_lea.vmem [#allocation3], %s245
        %s247 = smul.u32 4, %s14
        %s248 = smul.u32 4, %s14
        %v249 = vld [vmem:[%s1] sm:$0xff]
        %v250 = vld [vmem:[%s1 + $0x8] sm:$0xff]
        %v251 = vld [vmem:[%s227] sm:$0xff]
        %v252 = vld [vmem:[%s227 + $0x8] sm:$0xff]
        %v253 = vld [vmem:[%s227 + $0x10] sm:$0xff]
        %v254 = vld [vmem:[%s227 + $0x18] sm:$0xff]
        %v255 = vld [vmem:[%s227 + $0x20] sm:$0xff]
        %v256 = vld [vmem:[%s227 + $0x28] sm:$0xff]
        %v257 = vld [vmem:[%s227 + $0x30] sm:$0xff]
        %v258 = vld [vmem:[%s227 + $0x38] sm:$0xff]
        %v259 = vld [vmem:[%s227 + $0x40] sm:$0xff]
        %v260 = vld [vmem:[%s227 + $0x48] sm:$0xff]
        %v261 = vld [vmem:[%s227 + $0x50] sm:$0xff]
        %v262 = vld [vmem:[%s227 + $0x58] sm:$0xff]
        %v263 = vld [vmem:[%s227 + $0x60] sm:$0xff]
        %v264 = vld [vmem:[%s227 + $0x68] sm:$0xff]
        %v265 = vld [vmem:[%s227 + $0x70] sm:$0xff]
        %v266 = vld [vmem:[%s227 + $0x78] sm:$0xff]
        %v267 = vld [vmem:[%s227 + $0x80] sm:$0xff]
        %v268 = vld [vmem:[%s227 + $0x88] sm:$0xff]
        %v269 = vld [vmem:[%s227 + $0x90] sm:$0xff]
        %v270 = vld [vmem:[%s227 + $0x98] sm:$0xff]
        %v271 = vld [vmem:[%s227 + $0xa0] sm:$0xff]
        %v272 = vld [vmem:[%s227 + $0xa8] sm:$0xff]
        %v273 = vld [vmem:[%s227 + $0xb0] sm:$0xff]
        %v274 = vld [vmem:[%s227 + $0xb8] sm:$0xff]
        %v275 = vld [vmem:[%s227 + $0xc0] sm:$0xff]
        %v276 = vld [vmem:[%s227 + $0xc8] sm:$0xff]
        %v277 = vld [vmem:[%s227 + $0xd0] sm:$0xff]
        %v278 = vld [vmem:[%s227 + $0xd8] sm:$0xff]
        %v279 = vld [vmem:[%s227 + $0xe0] sm:$0xff]
        %v280 = vld [vmem:[%s227 + $0xe8] sm:$0xff]
        %v281 = vld [vmem:[%s227 + $0xf0] sm:$0xff]
        %v282 = vld [vmem:[%s227 + $0xf8] sm:$0xff]
        %v283 = vld [vmem:[%s2] sm:$0xff]
        %v284 = vld [vmem:[%s2 + $0x8] sm:$0xff]
        %286 = vset.pattern.permute.xlu0 0
        %287 = vperm.xlu0 %286, %v283
        %v288 = vpop.permute.xlu0 %287
        %291 = vset.pattern.permute.xlu0 0
        %292 = vperm.xlu0 %291, %v284
        %v293 = vpop.permute.xlu0 %292
        %vm295 = vcmask 523264
        %v297 = vsel %vm295, %v249, 0
        %v300 = vsel %vm295, %v250, 0
        %302 = vmatpush.msra.mxu0 0.0
        %303 = vmatpush.msra.mxu0 0.0
        %304 = vmatpush.msra.mxu0 0.0
        %305 = vmatpush.msra.mxu0 0.0
        %306 = vmatpush.msra.mxu0 0.0
        %307 = vmatpush.msra.mxu0 0.0
        %308 = vmatpush.msra.mxu0 0.0
        %309 = vmatpush.msra.mxu0 0.0
        %310 = vmatpush.msra.mxu0 %v279
        %311 = vmatpush.msra.mxu0 %v275
        %312 = vmatpush.msra.mxu0 %v271
        %313 = vmatpush.msra.mxu0 %v267
        %314 = vmatpush.msra.mxu0 %v263
        %315 = vmatpush.msra.mxu0 %v259
        %316 = vmatpush.msra.mxu0 %v255
        %317 = vmatpush.msra.mxu0 %v251
        %318 = vmatmul.f32.gmra.mxu0 %v297
        %v319 = vpop.f32.mrf.mxu0
        %v320 = vadd.f32 %v288, %v319
        %321 = vmatmul.f32.gmra.mxu0 %v300
        %v322 = vpop.f32.mrf.mxu0
        %v323 = vadd.f32 %v293, %v322
        %324 = vdwg.mxu0
        %325 = vmatpush.msra.mxu0 0.0
        %326 = vmatpush.msra.mxu0 0.0
        %327 = vmatpush.msra.mxu0 0.0
        %328 = vmatpush.msra.mxu0 0.0
        %329 = vmatpush.msra.mxu0 0.0
        %330 = vmatpush.msra.mxu0 0.0
        %331 = vmatpush.msra.mxu0 0.0
        %332 = vmatpush.msra.mxu0 0.0
        %333 = vmatpush.msra.mxu0 %v280
        %334 = vmatpush.msra.mxu0 %v276
        %335 = vmatpush.msra.mxu0 %v272
        %336 = vmatpush.msra.mxu0 %v268
        %337 = vmatpush.msra.mxu0 %v264
        %338 = vmatpush.msra.mxu0 %v260
        %339 = vmatpush.msra.mxu0 %v256
        %340 = vmatpush.msra.mxu0 %v252
        %341 = vmatmul.f32.gmra.mxu0 %v297
        %v342 = vpop.f32.mrf.mxu0
        %v343 = vadd.f32 %v288, %v342
        %344 = vmatmul.f32.gmra.mxu0 %v300
        %v345 = vpop.f32.mrf.mxu0
        %v346 = vadd.f32 %v293, %v345
        %347 = vdwg.mxu0
        %348 = vmatpush.msra.mxu0 0.0
        %349 = vmatpush.msra.mxu0 0.0
        %350 = vmatpush.msra.mxu0 0.0
        %351 = vmatpush.msra.mxu0 0.0
        %352 = vmatpush.msra.mxu0 0.0
        %353 = vmatpush.msra.mxu0 0.0
        %354 = vmatpush.msra.mxu0 0.0
        %355 = vmatpush.msra.mxu0 0.0
        %356 = vmatpush.msra.mxu0 %v281
        %357 = vmatpush.msra.mxu0 %v277
        %358 = vmatpush.msra.mxu0 %v273
        %359 = vmatpush.msra.mxu0 %v269
        %360 = vmatpush.msra.mxu0 %v265
        %361 = vmatpush.msra.mxu0 %v261
        %362 = vmatpush.msra.mxu0 %v257
        %363 = vmatpush.msra.mxu0 %v253
        %364 = vmatmul.f32.gmra.mxu0 %v297
        %v365 = vpop.f32.mrf.mxu0
        %v366 = vadd.f32 %v288, %v365
        %367 = vmatmul.f32.gmra.mxu0 %v300
        %v368 = vpop.f32.mrf.mxu0
        %v369 = vadd.f32 %v293, %v368
        %370 = vdwg.mxu0
        %371 = vmatpush.msra.mxu0 0.0
        %372 = vmatpush.msra.mxu0 0.0
        %373 = vmatpush.msra.mxu0 0.0
        %374 = vmatpush.msra.mxu0 0.0
        %375 = vmatpush.msra.mxu0 0.0
        %376 = vmatpush.msra.mxu0 0.0
        %377 = vmatpush.msra.mxu0 0.0
        %378 = vmatpush.msra.mxu0 0.0
        %379 = vmatpush.msra.mxu0 %v282
        %380 = vmatpush.msra.mxu0 %v278
        %381 = vmatpush.msra.mxu0 %v274
        %382 = vmatpush.msra.mxu0 %v270
        %383 = vmatpush.msra.mxu0 %v266
        %384 = vmatpush.msra.mxu0 %v262
        %385 = vmatpush.msra.mxu0 %v258
        %386 = vmatpush.msra.mxu0 %v254
        %387 = vmatmul.f32.gmra.mxu0 %v297
        %v388 = vpop.f32.mrf.mxu0
        %v389 = vadd.f32 %v288, %v388
        %390 = vmatmul.f32.gmra.mxu0 %v300
        %v391 = vpop.f32.mrf.mxu0
        %v392 = vadd.f32 %v293, %v391
        %393 = vdwg.mxu0
        %v394 = vmax.f32 %v320, 0.0
        %v395 = vmax.f32 %v343, 0.0
        %v396 = vmax.f32 %v366, 0.0
        %v397 = vmax.f32 %v389, 0.0
        %v398 = vmax.f32 %v323, 0.0
        %v399 = vmax.f32 %v346, 0.0
        %v400 = vmax.f32 %v369, 0.0
        %v401 = vmax.f32 %v392, 0.0
        %v402 = vmin.f32 %v394, 1.0
        %v403 = vmin.f32 %v395, 1.0
        %v404 = vmin.f32 %v396, 1.0
        %v405 = vmin.f32 %v397, 1.0
        %v406 = vmin.f32 %v398, 1.0
        %v407 = vmin.f32 %v399, 1.0
        %v408 = vmin.f32 %v400, 1.0
        %v409 = vmin.f32 %v401, 1.0
        %v410 = vmul.f32 %v402, 1.442695
        %v411 = vpow.pop %v410
        %v412 = vmul.f32 %v403, 1.442695
        %v413 = vpow.pop %v412
        %v414 = vmul.f32 %v404, 1.442695
        %v415 = vpow.pop %v414
        %v416 = vmul.f32 %v405, 1.442695
        %v417 = vpow.pop %v416
        %v418 = vmul.f32 %v406, 1.442695
        %v419 = vpow.pop %v418
        %v420 = vmul.f32 %v407, 1.442695
        %v421 = vpow.pop %v420
        %v422 = vmul.f32 %v408, 1.442695
        %v423 = vpow.pop %v422
        %v424 = vmul.f32 %v409, 1.442695
        %v425 = vpow.pop %v424
        %v426 = vadd.f32 %v411, %v419
        %v427 = vrot.slane %v426, 4
        %v428 = vadd.f32 %v426, %v427
        %v429 = vrot.slane %v428, 2
        %v430 = vadd.f32 %v428, %v429
        %v431 = vrot.slane %v430, 1
        %v432 = vadd.f32 %v430, %v431
        %v433 = vadd.f32 %v413, %v421
        %v434 = vrot.slane %v433, 4
        %v435 = vadd.f32 %v433, %v434
        %v436 = vrot.slane %v435, 2
        %v437 = vadd.f32 %v435, %v436
        %v438 = vrot.slane %v437, 1
        %v439 = vadd.f32 %v437, %v438
        %v440 = vadd.f32 %v415, %v423
        %v441 = vrot.slane %v440, 4
        %v442 = vadd.f32 %v440, %v441
        %v443 = vrot.slane %v442, 2
        %v444 = vadd.f32 %v442, %v443
        %v445 = vrot.slane %v444, 1
        %v446 = vadd.f32 %v444, %v445
        %v447 = vadd.f32 %v417, %v425
        %v448 = vrot.slane %v447, 4
        %v449 = vadd.f32 %v447, %v448
        %v450 = vrot.slane %v449, 2
        %v451 = vadd.f32 %v449, %v450
        %v452 = vrot.slane %v451, 1
        %v453 = vadd.f32 %v451, %v452
        %v454 = vrcp.pop %v432
        %v455 = vrcp.pop %v439
        %v456 = vrcp.pop %v446
        %v457 = vrcp.pop %v453
        %v458 = vmul.f32 %v432, %v454
        %v459 = vmul.f32 %v439, %v455
        %v460 = vmul.f32 %v446, %v456
        %v461 = vmul.f32 %v453, %v457
        %v462 = vsub.f32 2.0, %v458
        %v463 = vsub.f32 2.0, %v459
        %v464 = vsub.f32 2.0, %v460
        %v465 = vsub.f32 2.0, %v461
        %v466 = vmul.f32 %v454, %v462
        %v467 = vmul.f32 %v455, %v463
        %v468 = vmul.f32 %v456, %v464
        %v469 = vmul.f32 %v457, %v465
        %v470 = vmul.f32 %v466, 2.0
        %v471 = vmul.f32 %v467, 2.0
        %v472 = vmul.f32 %v468, 2.0
        %v473 = vmul.f32 %v469, 2.0
        %v474 = vmul.f32 %v411, %v470
        %v475 = vmul.f32 %v413, %v471
        %v476 = vmul.f32 %v415, %v472
        %v477 = vmul.f32 %v417, %v473
        %v478 = vmul.f32 %v419, %v470
        %v479 = vmul.f32 %v421, %v471
        %v480 = vmul.f32 %v423, %v472
        %v481 = vmul.f32 %v425, %v473
        %482 = vst [vmem:[%s246] sm:$0xff] %v474
        %483 = vst [vmem:[%s246 + $0x8] sm:$0xff] %v475
        %484 = vst [vmem:[%s246 + $0x10] sm:$0xff] %v476
        %485 = vst [vmem:[%s246 + $0x18] sm:$0xff] %v477
        %486 = vst [vmem:[%s246 + $0x20] sm:$0xff] %v478
        %487 = vst [vmem:[%s246 + $0x28] sm:$0xff] %v479
        %488 = vst [vmem:[%s246 + $0x30] sm:$0xff] %v480
        %489 = vst [vmem:[%s246 + $0x38] sm:$0xff] %v481
        %s490 = sand.u32 %s90, 1
        %s491 = sand.u32 %s90, 1
        %s492 = smul.addr %s491, 64
        %s493 = scalar_lea.vmem [#allocation3], %s492
        // Predicated region
        $region56: #{model_forward.1} parent=50 // pred_check
          %p494 = pneg %p100
        $region57: #{model_forward.1} parent=50 // pred_check_branch
          %496 = sbr.rel (%p494) target = $region59
        $region58: #{model_forward.1} parent=50 // pred_region
          %s497 = smul.u32 4, %s14
          %s498 = smul.addr %s497, 8
          %s499 = scalar_lea.vmem %s3, %s498
          // Predicated region
          $region60: #{model_forward.1} parent=58 // pred_check
            _
          $region61: #{model_forward.1} parent=58 // pred_check_branch
            %501 = sbr.rel (0) target = $region63
          $region62: #{model_forward.1} parent=58 // pred_region
            // Predicated region
            $region64: #{model_forward.1} parent=62 // pred_check
              _
            $region65: #{model_forward.1} parent=62 // pred_check_branch
              %503 = sbr.rel (0) target = $region67
            $region66: #{model_forward.1} parent=62 // pred_region
              loop: start=0, step=1, limit=1
              $region68: #{model_forward.1} parent=66 // loop_pre_header
                _
              $region69: #{model_forward.1} parent=66 // loop_header
                %s505 = sphi 0, %s509
                %p506 = scmp.ge.s32.totalorder %s505, 1
                %s510 = sphi %s493, %s493
                %s511 = sphi %s499, %s499
              $region70: #{model_forward.1} parent=66 // loop_header_branch
                %508 = sbr.rel (%p506) target = $region74
              $region71: #{model_forward.1} parent=66 // loop_body
                %v512 = vld [vmem:[%s510] sm:$0xff]
                %513 = vst [vmem:[%s511] sm:$0xff] %v512
                %v514 = vld [vmem:[%s510 + $0x8] sm:$0xff]
                %515 = vst [vmem:[%s511 + $0x8] sm:$0xff] %v514
                %v516 = vld [vmem:[%s510 + $0x10] sm:$0xff]
                %517 = vst [vmem:[%s511 + $0x10] sm:$0xff] %v516
                %v518 = vld [vmem:[%s510 + $0x18] sm:$0xff]
                %519 = vst [vmem:[%s511 + $0x18] sm:$0xff] %v518
                %v520 = vld [vmem:[%s510 + $0x20] sm:$0xff]
                %521 = vst [vmem:[%s511 + $0x40] sm:$0xff] %v520
                %v522 = vld [vmem:[%s510 + $0x28] sm:$0xff]
                %523 = vst [vmem:[%s511 + $0x48] sm:$0xff] %v522
                %v524 = vld [vmem:[%s510 + $0x30] sm:$0xff]
                %525 = vst [vmem:[%s511 + $0x50] sm:$0xff] %v524
                %v526 = vld [vmem:[%s510 + $0x38] sm:$0xff]
                %527 = vst [vmem:[%s511 + $0x58] sm:$0xff] %v526
              $region72: #{model_forward.1} parent=66 // loop_footer
                %s509 = sadd.s32 1, %s505
              $region73: #{model_forward.1} parent=66 // loop_footer_branch
                %504 = sbr.rel target = $region69
              $region74: #{model_forward.1} parent=66 // loop_exit
                _
            $region67: #{model_forward.1} parent=62 // pred_fallthru
              _
            // Predicated region
            $region75: #{model_forward.1} parent=62 // pred_check
              _
            $region76: #{model_forward.1} parent=62 // pred_check_branch
              %529 = sbr.rel target = $region78
            $region77: #{model_forward.1} parent=62 // pred_region
              _
            $region78: #{model_forward.1} parent=62 // pred_fallthru
              _
          $region63: #{model_forward.1} parent=58 // pred_fallthru
            _
          %530 = vnop
        $region59: #{model_forward.1} parent=50 // pred_fallthru
          _
      $region51: #{model_forward.1} parent=5 // pred_fallthru
        _
      %p531 = scmp.le.s32.totalorder 2, %s9
      // Predicated region
      $region79: #{model_forward.1} parent=5 // pred_check
        %p532 = pneg %p531
      $region80: #{model_forward.1} parent=5 // pred_check_branch
        %534 = sbr.rel (%p532) target = $region82
      $region81: #{model_forward.1} parent=5 // pred_region
        %s535 = ssub.s32 %s9, 2
        // Predicated region
        $region83: #{model_forward.1} parent=81 // pred_check
          %p536 = pneg %p106
        $region84: #{model_forward.1} parent=81 // pred_check_branch
          %538 = sbr.rel (%p536) target = $region86
        $region85: #{model_forward.1} parent=81 // pred_region
          %s539 = sand.u32 %s91, 1
          %s540 = sand.u32 %s91, 1
          %s541 = smul.addr %s540, 64
          %s542 = scalar_lea.vmem [#allocation3], %s541
        $region86: #{model_forward.1} parent=81 // pred_fallthru
          _
      $region82: #{model_forward.1} parent=5 // pred_fallthru
        _
    $region6: #{model_forward.1} parent=1 // loop_footer
      %s13 = sadd.s32 1, %s9
    $region7: #{model_forward.1} parent=1 // loop_footer_branch
      %8 = sbr.rel target = $region3
    $region8: #{model_forward.1} parent=1 // loop_exit
      _

</llo_original>
